<compile_context>
chip_gen: v7x
topology: tpu7x:2x2x1
jax: 0.10.0
libtpu: 0.0.40
codegen_flags: <defaults>
</compile_context>

<pallas_src>
import functools
import math

import jax
import jax.numpy as jnp
from jax.experimental import pallas as pl
from jax.experimental.pallas import tpu as pltpu


def _round_up(x, m):
    return ((x + m - 1) // m) * m


def _tpu_budgets():
    """(max_block_bytes, vmem_limit_bytes) sized per TPU generation."""
    try:
        vmem = pltpu.get_tpu_info().vmem_capacity_bytes
    except Exception:
        vmem = 64 << 20  # conservative fallback (v7x-sized)
    if vmem >= (100 << 20):          # v5e / v6e: 128 MiB physical VMEM
        return 6 << 20, 64 << 20
    return 2 << 20, 32 << 20         # v7x: 64 MiB physical VMEM per TC


def _riu_kernel(x_ref, w1_ref, b1_ref, w2_ref, b2_ref, emb_ref, prob_ref,
                acc_ref, *, batch, sub_rows, n_tokens, embed, ea, lane_tile):
    """One grid step over a lane-dense (rows, lane_tile) slab of x."""
    w = pl.program_id(0)
    nw = pl.num_programs(0)

    # ---- init accumulator on first step --------------------------------
    @pl.when(w == 0)
    def _init():
        acc_ref[...] = jnp.zeros_like(acc_ref)

    xb = x_ref[...]                                   # (rows, lane_tile)

    # ---- streaming path: emb = ReLU(x), stays in input dtype ------------
    emb_ref[...] = jnp.maximum(xb, jnp.zeros((), xb.dtype)).astype(emb_ref.dtype)

    # ---- selector partial sum into (rows, Ea) f32 accumulator -----------
    # Every Ea-wide chunk of a sub-row starts at a column that is a multiple
    # of Ea (hence of E), so accumulator column m always maps to embed index
    # m % E; the finalize fold below recovers the exact token sum.
    n_chunks = lane_tile // ea
    if n_chunks == 1:
        acc_ref[...] = acc_ref[...] + xb.astype(jnp.float32)
    else:
        def body(j, part):
            off = pl.multiple_of(j * ea, ea)
            return part + x_ref[:, pl.ds(off, ea)].astype(jnp.float32)

        part = jax.lax.fori_loop(
            0, n_chunks, body, jnp.zeros(acc_ref.shape, jnp.float32),
            unroll=(4 if n_chunks >= 4 else True))
        acc_ref[...] = acc_ref[...] + part

    # ---- finalize: mean -> Linear -> ReLU -> Linear(+bias) -> sigmoid ---
    @pl.when(w == nw - 1)
    def _finalize():
        acc = acc_ref[...]                            # (rows, Ea) f32
        r = sub_rows
        if r == 1:
            xm = acc                                  # (B, Ea)
        else:
            parts = []
            for b in range(batch):
                blk = acc[b * r:(b + 1) * r, :]       # (r, Ea) static slice
                parts.append(jnp.sum(blk, axis=0, keepdims=True))
            xm = jnp.concatenate(parts, axis=0)       # (B, Ea)

        xe = xm[:, 0:embed]
        for k in range(1, ea // embed):
            xe = xe + xm[:, k * embed:(k + 1) * embed]
        xe = xe * (1.0 / n_tokens)                    # mean over tokens (f32)

        h = jnp.dot(xe, w1_ref[...].astype(jnp.float32),
                    preferred_element_type=jnp.float32)
        h = jnp.maximum(h + b1_ref[...].astype(jnp.float32), 0.0)
        logits = jnp.dot(h, w2_ref[...].astype(jnp.float32),
                         preferred_element_type=jnp.float32)
        logits = logits + b2_ref[...].astype(jnp.float32)
        prob_ref[...] = jax.nn.sigmoid(logits).astype(prob_ref.dtype)


def rectified_identity_unit(x, w1, b1, w2, b2, *, lane_tile=None,
                            donate_x=False):
    """x: (B, S, E); w1: (E, H); b1: (1, H); w2: (H, P); b2: (1, P)."""
    B, S, E = x.shape
    H = w1.shape[1]
    P = w2.shape[1]
    W = S * E
    Ea = math.lcm(E, 128)
    itemsize = jnp.dtype(x.dtype).itemsize

    # Fill the sublane dimension: rows = lcm(B, 8) >= 8, multiple of 8.
    rows = math.lcm(B, 8)
    r = rows // B                                     # sub-rows per batch row

    max_block_bytes, vmem_limit = _tpu_budgets()
    per_row_min = (W + r - 1) // r

    if lane_tile is None:
        target = max(Ea, (max_block_bytes // (rows * itemsize)) // Ea * Ea)
        lane_tile = min(target, _round_up(per_row_min, Ea))
    assert lane_tile % Ea == 0, "lane_tile must be a multiple of lcm(E,128)"

    per_row = _round_up(per_row_min, lane_tile)       # width of one sub-row
    Wp = per_row * r                                  # padded width per batch
    n_tiles = per_row // lane_tile

    x2d = x.reshape(B, W)
    if Wp != W:
        # Zero padding is harmless for the token sum; emb is sliced back below.
        # TODO(synk): a masked tail tile would avoid this extra copy of x.
        x2d = jnp.pad(x2d, ((0, 0), (0, Wp - W)))
    x2d = x2d.reshape(rows, per_row)                  # free layout plumbing

    kernel = functools.partial(_riu_kernel, batch=B, sub_rows=r, n_tokens=S,
                               embed=E, ea=Ea, lane_tile=lane_tile)

    cost = pl.CostEstimate(
        flops=2 * rows * per_row + 2 * B * E * H + 2 * B * H * P,
        transcendentals=B * P,
        bytes_accessed=2 * rows * per_row * itemsize
        + (E * H + H + H * P + P) * 4 + B * P * 4,
    )

    emb2d, prob = pl.pallas_call(
        kernel,
        grid=(n_tiles,),
        in_specs=[
            pl.BlockSpec((rows, lane_tile), lambda w: (0, w)),   # x slab
            pl.BlockSpec((E, H), lambda w: (0, 0)),              # w1 (resident)
            pl.BlockSpec((1, H), lambda w: (0, 0)),              # b1
            pl.BlockSpec((H, P), lambda w: (0, 0)),              # w2
            pl.BlockSpec((1, P), lambda w: (0, 0)),              # b2
        ],
        out_specs=(
            pl.BlockSpec((rows, lane_tile), lambda w: (0, w)),   # emb slab
            pl.BlockSpec((B, P), lambda w: (0, 0)),              # prob (resident)
        ),
        out_shape=(
            jax.ShapeDtypeStruct((rows, per_row), x.dtype),
            jax.ShapeDtypeStruct((B, P), jnp.float32),
        ),
        scratch_shapes=[pltpu.VMEM((rows, Ea), jnp.float32)],
        compiler_params=pltpu.CompilerParams(
            # The grid axis carries the selector accumulator -> "arbitrary".
            dimension_semantics=("arbitrary",),
            vmem_limit_bytes=vmem_limit,
        ),
        cost_estimate=cost,
        input_output_aliases=({0: 0} if donate_x else {}),
    )(x2d, w1, b1, w2, b2)

    emb = emb2d.reshape(B, Wp)
    if Wp != W:
        emb = emb[:, :W]
    return emb.reshape(B, S, E), prob


def _reference(x, w1, b1, w2, b2):
    emb = jnp.maximum(x, 0.0)
    xm = jnp.mean(x, axis=1)
    h = jnp.maximum(xm @ w1 + b1, 0.0)
    prob = jax.nn.sigmoid(h @ w2 + b2)
    return emb, prob


if __name__ == "__main__":
    # Shapes consistent with the module: cfg.embed_size=32, cfg.hid_selector=16,
    # num_out_path=4, batch=2.
    B, E, H, P = 2, 32, 16, 4

    key = jax.random.PRNGKey(0)
    kx1, kx2, kx3, kw1, kb1, kw2 = jax.random.split(key, 6)

    # nn.Linear-style uniform init; Selector.init_weights sets mlp[2].bias=1.5.
    bound1 = 1.0 / (E ** 0.5)
    w1 = jax.random.uniform(kw1, (E, H), minval=-bound1, maxval=bound1,
                            dtype=jnp.float32)
    b1 = jax.random.uniform(kb1, (1, H), minval=-bound1, maxval=bound1,
                            dtype=jnp.float32)
    bound2 = 1.0 / (H ** 0.5)
    w2 = jax.random.uniform(kw2, (H, P), minval=-bound2, maxval=bound2,
                            dtype=jnp.float32)
    b2 = jnp.full((1, P), 1.5, dtype=jnp.float32)

    def check(x, **kw):
        emb, prob = rectified_identity_unit(x, w1, b1, w2, b2, **kw)
        jax.block_until_ready((emb, prob))
        emb_r, prob_r = _reference(x, w1, b1, w2, b2)
        assert jnp.allclose(emb, emb_r, atol=1e-5), "emb mismatch"
        assert jnp.allclose(prob, prob_r, atol=1e-5), "path_prob mismatch"

    # Case 1: module-default tiny shape (seq=8); auto tile -> single grid step.
    x1 = jax.random.normal(kx1, (B, 8, E), dtype=jnp.float32)
    check(x1)

    # Case 2: ragged width (seq=40) with lane_tile=128 -> exercises zero
    # padding, a 3-step grid, and the pl.when init/accumulate/finalize paths.
    x2 = jax.random.normal(kx2, (B, 40, E), dtype=jnp.float32)
    check(x2, lane_tile=128)

    # Case 3: lane_tile=256 -> exercises the fori_loop Ea-chunk accumulation.
    x3 = jax.random.normal(kx3, (B, 40, E), dtype=jnp.float32)
    check(x3, lane_tile=256)

    print("KERNEL_OK")
</pallas_src>

<mosaic_0001>
module attributes {stable_mosaic.version = 11 : i64} {
  func.func @_riu_kernel(%arg0: i32, %arg1: memref<8x128xf32, #tpu.memory_space<vmem>>, %arg2: memref<32x16xf32, #tpu.memory_space<vmem>>, %arg3: memref<1x16xf32, #tpu.memory_space<vmem>>, %arg4: memref<16x4xf32, #tpu.memory_space<vmem>>, %arg5: memref<1x4xf32, #tpu.memory_space<vmem>>, %arg6: memref<8x128xf32, #tpu.memory_space<vmem>>, %arg7: memref<2x4xf32, #tpu.memory_space<vmem>>, %arg8: memref<8x128xf32, #tpu.memory_space<vmem>>) attributes {dimension_semantics = [#tpu.dimension_semantics<arbitrary>], iteration_bounds = array<i64: 1>, scalar_prefetch = 0 : i64, scratch_operands = 1 : i64, tpu.core_type = #tpu.core_type<tc>, window_params = [{transform_indices = @transform_0, window_bounds = array<i64: 8, 128>}, {pipeline_mode = #tpu.pipeline_mode<synchronous>, transform_indices = @transform_1, window_bounds = array<i64: 32, 16>}, {pipeline_mode = #tpu.pipeline_mode<synchronous>, transform_indices = @transform_2, window_bounds = array<i64: 1, 16>}, {pipeline_mode = #tpu.pipeline_mode<synchronous>, transform_indices = @transform_3, window_bounds = array<i64: 16, 4>}, {pipeline_mode = #tpu.pipeline_mode<synchronous>, transform_indices = @transform_4, window_bounds = array<i64: 1, 4>}, {transform_indices = @transform_5, window_bounds = array<i64: 8, 128>}, {pipeline_mode = #tpu.pipeline_mode<synchronous>, transform_indices = @transform_6, window_bounds = array<i64: 2, 4>}]} {
    %c0_i32 = arith.constant 0 : i32
    %0 = arith.cmpi eq, %arg0, %c0_i32 : i32
    %1 = arith.extui %0 : i1 to i32
    %c0_i32_0 = arith.constant 0 : i32
    %2 = arith.cmpi ne, %1, %c0_i32_0 : i32
    scf.if %2 {
      %cst_10 = arith.constant 0.000000e+00 : f32
      %13 = vector.broadcast %cst_10 : f32 to vector<8x128xf32>
      %c0_11 = arith.constant 0 : index
      %c0_12 = arith.constant 0 : index
      %14 = vector.load %arg8[%c0_11, %c0_12] : memref<8x128xf32, #tpu.memory_space<vmem>>, vector<8x128xf32>
      tpu.vector_store %arg8[%c0_11, %c0_12], %13 {strides = array<i32>} : memref<8x128xf32, #tpu.memory_space<vmem>>, vector<8x128xf32>,
    } else {
    }
    %c0 = arith.constant 0 : index
    %c0_1 = arith.constant 0 : index
    %3 = vector.load %arg1[%c0, %c0_1] : memref<8x128xf32, #tpu.memory_space<vmem>>, vector<8x128xf32>
    %cst = arith.constant 0.000000e+00 : f32
    %4 = vector.broadcast %cst : f32 to vector<8x128xf32>
    %5 = arith.maximumf %3, %4 : vector<8x128xf32>
    %c0_2 = arith.constant 0 : index
    %c0_3 = arith.constant 0 : index
    %6 = vector.load %arg6[%c0_2, %c0_3] : memref<8x128xf32, #tpu.memory_space<vmem>>, vector<8x128xf32>
    tpu.vector_store %arg6[%c0_2, %c0_3], %5 {strides = array<i32>} : memref<8x128xf32, #tpu.memory_space<vmem>>, vector<8x128xf32>,
    %c0_4 = arith.constant 0 : index
    %c0_5 = arith.constant 0 : index
    %7 = vector.load %arg8[%c0_4, %c0_5] : memref<8x128xf32, #tpu.memory_space<vmem>>, vector<8x128xf32>
    %8 = arith.addf %7, %3 : vector<8x128xf32>
    %c0_6 = arith.constant 0 : index
    %c0_7 = arith.constant 0 : index
    %9 = vector.load %arg8[%c0_6, %c0_7] : memref<8x128xf32, #tpu.memory_space<vmem>>, vector<8x128xf32>
    tpu.vector_store %arg8[%c0_6, %c0_7], %8 {strides = array<i32>} : memref<8x128xf32, #tpu.memory_space<vmem>>, vector<8x128xf32>,
    %c0_i32_8 = arith.constant 0 : i32
    %10 = arith.cmpi eq, %arg0, %c0_i32_8 : i32
    %11 = arith.extui %10 : i1 to i32
    %c0_i32_9 = arith.constant 0 : i32
    %12 = arith.cmpi ne, %11, %c0_i32_9 : i32
    scf.if %12 {
      %c0_10 = arith.constant 0 : index
      %c0_11 = arith.constant 0 : index
      %13 = vector.load %arg8[%c0_10, %c0_11] : memref<8x128xf32, #tpu.memory_space<vmem>>, vector<8x128xf32>
      %14 = vector.extract_strided_slice %13 {offsets = [0, 0], sizes = [4, 128], strides = [1, 1]} : vector<8x128xf32> to vector<4x128xf32>
      %cst_12 = arith.constant dense<0.000000e+00> : vector<128xf32>
      %15 = vector.multi_reduction <add>, %14, %cst_12 [0] : vector<4x128xf32> to vector<128xf32>
      %16 = vector.shape_cast %15 : vector<128xf32> to vector<1x128xf32>
      %17 = vector.extract_strided_slice %13 {offsets = [4, 0], sizes = [4, 128], strides = [1, 1]} : vector<8x128xf32> to vector<4x128xf32>
      %cst_13 = arith.constant dense<0.000000e+00> : vector<128xf32>
      %18 = vector.multi_reduction <add>, %17, %cst_13 [0] : vector<4x128xf32> to vector<128xf32>
      %19 = vector.shape_cast %18 : vector<128xf32> to vector<1x128xf32>
      %20 = tpu.concatenate %16, %19 in 0 : vector<1x128xf32>, vector<1x128xf32> -> vector<2x128xf32>
      %21 = vector.extract_strided_slice %20 {offsets = [0, 0], sizes = [2, 32], strides = [1, 1]} : vector<2x128xf32> to vector<2x32xf32>
      %22 = vector.extract_strided_slice %20 {offsets = [0, 32], sizes = [2, 32], strides = [1, 1]} : vector<2x128xf32> to vector<2x32xf32>
      %23 = arith.addf %21, %22 : vector<2x32xf32>
      %24 = vector.extract_strided_slice %20 {offsets = [0, 64], sizes = [2, 32], strides = [1, 1]} : vector<2x128xf32> to vector<2x32xf32>
      %25 = arith.addf %23, %24 : vector<2x32xf32>
      %26 = vector.extract_strided_slice %20 {offsets = [0, 96], sizes = [2, 32], strides = [1, 1]} : vector<2x128xf32> to vector<2x32xf32>
      %27 = arith.addf %25, %26 : vector<2x32xf32>
      %cst_14 = arith.constant 1.250000e-01 : f32
      %28 = vector.broadcast %cst_14 : f32 to vector<2x32xf32>
      %29 = arith.mulf %27, %28 : vector<2x32xf32>
      %c0_15 = arith.constant 0 : index
      %c0_16 = arith.constant 0 : index
      %30 = vector.load %arg2[%c0_15, %c0_16] : memref<32x16xf32, #tpu.memory_space<vmem>>, vector<32x16xf32>
      %cst_17 = arith.constant dense<0.000000e+00> : vector<2x16xf32>
      %31 = tpu.matmul %29, %30, %cst_17 {dimension_numbers = #tpu.dot_dimension_numbers<[1], [0], [0], [1], [0, 0, 1, 1], [], []>} : vector<2x32xf32>, vector<32x16xf32>, vector<2x16xf32> -> vector<2x16xf32>
      %c0_18 = arith.constant 0 : index
      %c0_19 = arith.constant 0 : index
      %32 = vector.load %arg3[%c0_18, %c0_19] : memref<1x16xf32, #tpu.memory_space<vmem>>, vector<1x16xf32>
      %33 = vector.broadcast %32 : vector<1x16xf32> to vector<2x16xf32>
      %34 = arith.addf %31, %33 : vector<2x16xf32>
      %cst_20 = arith.constant 0.000000e+00 : f32
      %35 = vector.broadcast %cst_20 : f32 to vector<2x16xf32>
      %36 = arith.maximumf %34, %35 : vector<2x16xf32>
      %c0_21 = arith.constant 0 : index
      %c0_22 = arith.constant 0 : index
      %37 = vector.load %arg4[%c0_21, %c0_22] : memref<16x4xf32, #tpu.memory_space<vmem>>, vector<16x4xf32>
      %cst_23 = arith.constant dense<0.000000e+00> : vector<2x4xf32>
      %38 = tpu.matmul %36, %37, %cst_23 {dimension_numbers = #tpu.dot_dimension_numbers<[1], [0], [0], [1], [0, 0, 1, 1], [], []>} : vector<2x16xf32>, vector<16x4xf32>, vector<2x4xf32> -> vector<2x4xf32>
      %c0_24 = arith.constant 0 : index
      %c0_25 = arith.constant 0 : index
      %39 = vector.load %arg5[%c0_24, %c0_25] : memref<1x4xf32, #tpu.memory_space<vmem>>, vector<1x4xf32>
      %40 = vector.broadcast %39 : vector<1x4xf32> to vector<2x4xf32>
      %41 = arith.addf %38, %40 : vector<2x4xf32>
      %42 = arith.negf %41 : vector<2x4xf32>
      %43 = math.exp %42 : vector<2x4xf32>
      %cst_26 = arith.constant 1.000000e+00 : f32
      %44 = vector.broadcast %cst_26 : f32 to vector<2x4xf32>
      %45 = arith.addf %44, %43 : vector<2x4xf32>
      %46 = arith.divf %44, %45 : vector<2x4xf32>
      %c0_27 = arith.constant 0 : index
      %c0_28 = arith.constant 0 : index
      %47 = vector.load %arg7[%c0_27, %c0_28] : memref<2x4xf32, #tpu.memory_space<vmem>>, vector<2x4xf32>
      tpu.vector_store %arg7[%c0_27, %c0_28], %46 {strides = array<i32>} : memref<2x4xf32, #tpu.memory_space<vmem>>, vector<2x4xf32>,
    } else {
    }
    return
  }
  func.func @transform_0(%arg0: i32) -> (i32, i32) {
    %c0_i32 = arith.constant 0 : i32
    %c0_i32_0 = arith.constant 0 : i32
    return %c0_i32, %arg0 : i32, i32
  }
  func.func @transform_1(%arg0: i32) -> (i32, i32) {
    %c0_i32 = arith.constant 0 : i32
    %c0_i32_0 = arith.constant 0 : i32
    %c0_i32_1 = arith.constant 0 : i32
    return %c0_i32, %c0_i32_0 : i32, i32
  }
  func.func @transform_2(%arg0: i32) -> (i32, i32) {
    %c0_i32 = arith.constant 0 : i32
    %c0_i32_0 = arith.constant 0 : i32
    %c0_i32_1 = arith.constant 0 : i32
    return %c0_i32, %c0_i32_0 : i32, i32
  }
  func.func @transform_3(%arg0: i32) -> (i32, i32) {
    %c0_i32 = arith.constant 0 : i32
    %c0_i32_0 = arith.constant 0 : i32
    %c0_i32_1 = arith.constant 0 : i32
    return %c0_i32, %c0_i32_0 : i32, i32
  }
  func.func @transform_4(%arg0: i32) -> (i32, i32) {
    %c0_i32 = arith.constant 0 : i32
    %c0_i32_0 = arith.constant 0 : i32
    %c0_i32_1 = arith.constant 0 : i32
    return %c0_i32, %c0_i32_0 : i32, i32
  }
  func.func @transform_5(%arg0: i32) -> (i32, i32) {
    %c0_i32 = arith.constant 0 : i32
    %c0_i32_0 = arith.constant 0 : i32
    return %c0_i32, %arg0 : i32, i32
  }
  func.func @transform_6(%arg0: i32) -> (i32, i32) {
    %c0_i32 = arith.constant 0 : i32
    %c0_i32_0 = arith.constant 0 : i32
    %c0_i32_1 = arith.constant 0 : i32
    return %c0_i32, %c0_i32_0 : i32, i32
  }
}

</mosaic_0001>

<llo_original>
// kernel: tpu_custom_call.1
$region0: #{tpu_custom_call.1}
  #allocation0 [shape = 'u32[]', space=smem, size = 0x4, offset = 0x4, fixed_abs, tag = 'smem constant byte address 0x4 - core index']
  #allocation1 [shape = 'u32[144,128]{1,0:T(1,128)}', space=vmem, size = 0x12000, scoped, tag = 'internal scratch']
  #allocation2 [shape = 'f32[8,128]{1,0:T(8,128)}', space=vmem, size = 0x1000, scoped, tag = 'scratch operand']
  %s0 = inlined_call_operand.vmem [shape: f32[8,128], index: 0, kind: input, shape index: {}]
  %s1 = inlined_call_operand.vmem [shape: f32[32,16], index: 1, kind: input, shape index: {}]
  %s2 = inlined_call_operand.vmem [shape: f32[1,16], index: 2, kind: input, shape index: {}]
  %s3 = inlined_call_operand.vmem [shape: f32[16,4], index: 3, kind: input, shape index: {}]
  %s4 = inlined_call_operand.vmem [shape: f32[1,4], index: 4, kind: input, shape index: {}]
  %s5 = inlined_call_operand.hbm [shape: f32[8,128], index: 5, kind: output, shape index: {0}]
  %s6 = inlined_call_operand.hbm [shape: f32[2,4], index: 6, kind: output, shape index: {1}]
  %7 = xla_tuple %s5, %s6
  %s8 = sld [smem:[#allocation0]]
  $region46: #{tpu_custom_call.1} parent=0
    _
  %s10 = ssub.s32 1, %s8
  %s11 = scalar_select 0, %s10, %s8
  $region1: #{tpu_custom_call.1} parent=0
    #allocation3 [shape = 'u8[4096]{0}', space=vmem, size = 0x1000, scoped, tag = 'output window, operand 0, single buffered']
    #allocation4 [shape = 's32[1]{0}', space=sflag, size = 0x4, scoped, tag = 'scoped memory for tpu_custom_call.1']
    #allocation5 [shape = 'u8[1024]{0}', space=vmem, size = 0x400, scoped, tag = 'output window, operand 1, single buffered']
    #allocation6 [shape = 's32[1]{0}', space=sflag, size = 0x4, scoped, tag = 'scoped memory for tpu_custom_call.1']
    %12 = vsyncpa [#allocation4], 0
    %13 = vsyncpa [#allocation6], 0
    // Predicated region
    $region2: #{tpu_custom_call.1} parent=1 // pred_check
      _
    $region3: #{tpu_custom_call.1} parent=1 // pred_check_branch
      %15 = sbr.rel (0) target = $region5
    $region4: #{tpu_custom_call.1} parent=1 // pred_region
      _
    $region5: #{tpu_custom_call.1} parent=1 // pred_fallthru
      _
    // Predicated region
    $region6: #{tpu_custom_call.1} parent=1 // pred_check
      _
    $region7: #{tpu_custom_call.1} parent=1 // pred_check_branch
      %17 = sbr.rel (0) target = $region9
    $region8: #{tpu_custom_call.1} parent=1 // pred_region
      _
    $region9: #{tpu_custom_call.1} parent=1 // pred_fallthru
      _
    // Predicated region
    $region10: #{tpu_custom_call.1} parent=1 // pred_check
      _
    $region11: #{tpu_custom_call.1} parent=1 // pred_check_branch
      %19 = sbr.rel (0) target = $region13
    $region12: #{tpu_custom_call.1} parent=1 // pred_region
      _
    $region13: #{tpu_custom_call.1} parent=1 // pred_fallthru
      _
    // Predicated region
    $region14: #{tpu_custom_call.1} parent=1 // pred_check
      _
    $region15: #{tpu_custom_call.1} parent=1 // pred_check_branch
      %21 = sbr.rel (0) target = $region17
    $region16: #{tpu_custom_call.1} parent=1 // pred_region
      _
    $region17: #{tpu_custom_call.1} parent=1 // pred_fallthru
      _
    // Predicated region
    $region18: #{tpu_custom_call.1} parent=1 // pred_check
      _
    $region19: #{tpu_custom_call.1} parent=1 // pred_check_branch
      %23 = sbr.rel (0) target = $region21
    $region20: #{tpu_custom_call.1} parent=1 // pred_region
      _
    $region21: #{tpu_custom_call.1} parent=1 // pred_fallthru
      _
    %p24 = scmp.eq.s32.totalorder 0, 0
    // Predicated region
    $region22: #{tpu_custom_call.1} parent=1 // pred_check
      %p25 = pneg %p24
    $region23: #{tpu_custom_call.1} parent=1 // pred_check_branch
      %27 = sbr.rel (%p25) target = $region25
    $region24: #{tpu_custom_call.1} parent=1 // pred_region
      %28 = vst [vmem:[#allocation2] sm:$0xff] 0.0
    $region25: #{tpu_custom_call.1} parent=1 // pred_fallthru
      _
    %v29 = vld [vmem:[%s0] sm:$0xff]
    %v30 = vmax.f32 %v29, 0.0
    %31 = vst [vmem:[#allocation3] sm:$0xff] %v30
    %v32 = vld [vmem:[#allocation2] sm:$0xff]
    %v33 = vadd.f32 %v32, %v29
    %34 = vst [vmem:[#allocation2] sm:$0xff] %v33
    // Predicated region
    $region26: #{tpu_custom_call.1} parent=1 // pred_check
      %p35 = pneg %p24
    $region27: #{tpu_custom_call.1} parent=1 // pred_check_branch
      %37 = sbr.rel (%p35) target = $region29
    $region28: #{tpu_custom_call.1} parent=1 // pred_region
      %v38 = vld [vmem:[#allocation2] sm:$0xff]
      %vm39 = vcmask 1043456
      %v40 = vsel %vm39, %v38, 0.0
      %v41 = vrot.slane %v40, 4
      %v42 = vadd.f32 %v40, %v41
      %v43 = vrot.slane %v42, 2
      %v44 = vadd.f32 %v42, %v43
      %v45 = vrot.slane %v44, 1
      %v46 = vadd.f32 %v44, %v45
      %v48 = vrot.slane %v38, 4
      %v50 = vsel %vm39, %v48, 0.0
      %v51 = vrot.slane %v50, 4
      %v52 = vadd.f32 %v50, %v51
      %v53 = vrot.slane %v52, 2
      %v54 = vadd.f32 %v52, %v53
      %v55 = vrot.slane %v54, 1
      %v56 = vadd.f32 %v54, %v55
      %vm57 = vcmask 1040384
      %v58 = vsel %vm57, %v46, %v56
      %60 = vrot.lane.b32.xlu0 %v58, 96
      %v61 = vpop.permute.xlu0 %60
      %v63 = vadd.f32 %v58, %v61
      %64 = vrot.lane.b32.xlu0 %v58, 64
      %v65 = vpop.permute.xlu0 %64
      %v67 = vadd.f32 %v63, %v65
      %68 = vrot.lane.b32.xlu0 %v58, 32
      %v69 = vpop.permute.xlu0 %68
      %v71 = vadd.f32 %v67, %v69
      %v72 = vmul.f32 %v71, 0.125
      %v73 = vld [vmem:[%s1] sm:$0xff]
      %v74 = vld [vmem:[%s1 + $0x8] sm:$0xff]
      %v75 = vld [vmem:[%s1 + $0x10] sm:$0xff]
      %v76 = vld [vmem:[%s1 + $0x18] sm:$0xff]
      %v77 = vld [vmem:[%s2] sm:$0x1]
      %v79 = vlaneseq
      %v80 = vshrl.u32 %v79, 7
      %v81 = vsub.s32 0, %v80
      %v82 = vrot.slane %v77, %v81
      %vm84 = vcmask 261120
      %v86 = vsel %vm84, %v72, 0
      %88 = vmatprep.subr.mxu0 0.0
      %89 = vmatpush1.msra.mxu0 %v73
      %90 = vmatprep.subr.mxu0 0.0
      %91 = vmatpush1.msra.mxu0 %v74
      %92 = vmatprep.subr.mxu0 0.0
      %93 = vmatpush1.msra.mxu0 %v75
      %94 = vmatprep.subr.mxu0 0.0
      %95 = vmatpush1.msra.mxu0 %v76
      %96 = vmatprep.subr.mxu0 0.0
      %97 = vmatpush1.msra.mxu0 0.0
      %98 = vmatprep.subr.mxu0 0.0
      %99 = vmatpush1.msra.mxu0 0.0
      %100 = vmatprep.subr.mxu0 0.0
      %101 = vmatpush1.msra.mxu0 0.0
      %102 = vmatprep.subr.mxu0 0.0
      %103 = vmatpush1.msra.mxu0 0.0
      %104 = vmatprep.subr.mxu0 0.0
      %105 = vmatpush1.msra.mxu0 0.0
      %106 = vmatprep.subr.mxu0 0.0
      %107 = vmatpush1.msra.mxu0 0.0
      %108 = vmatprep.subr.mxu0 0.0
      %109 = vmatpush1.msra.mxu0 0.0
      %110 = vmatprep.subr.mxu0 0.0
      %111 = vmatpush1.msra.mxu0 0.0
      %112 = vmatprep.subr.mxu0 0.0
      %113 = vmatpush1.msra.mxu0 0.0
      %114 = vmatprep.subr.mxu0 0.0
      %115 = vmatpush1.msra.mxu0 0.0
      %116 = vmatprep.subr.mxu0 0.0
      %117 = vmatpush1.msra.mxu0 0.0
      %118 = vmatprep.subr.mxu0 0.0
      %119 = vmatpush1.msra.mxu0 0.0
      %120 = vmatprep.subr.mxu0 0.0
      %121 = vmatpush1.msra.mxu0 0.0
      %122 = vmatprep.subr.mxu0 0.0
      %123 = vmatpush1.msra.mxu0 0.0
      %124 = vmatprep.subr.mxu0 0.0
      %125 = vmatpush1.msra.mxu0 0.0
      %126 = vmatprep.subr.mxu0 0.0
      %127 = vmatpush1.msra.mxu0 0.0
      %128 = vmatprep.subr.mxu0 0.0
      %129 = vmatpush1.msra.mxu0 0.0
      %130 = vmatprep.subr.mxu0 0.0
      %131 = vmatpush1.msra.mxu0 0.0
      %132 = vmatprep.subr.mxu0 0.0
      %133 = vmatpush1.msra.mxu0 0.0
      %134 = vmatprep.subr.mxu0 0.0
      %135 = vmatpush1.msra.mxu0 0.0
      %136 = vmatprep.subr.mxu0 0.0
      %137 = vmatpush1.msra.mxu0 0.0
      %138 = vmatprep.subr.mxu0 0.0
      %139 = vmatpush1.msra.mxu0 0.0
      %140 = vmatprep.subr.mxu0 0.0
      %141 = vmatpush1.msra.mxu0 0.0
      %142 = vmatprep.subr.mxu0 0.0
      %143 = vmatpush1.msra.mxu0 0.0
      %144 = vmatprep.subr.mxu0 0.0
      %145 = vmatpush1.msra.mxu0 0.0
      %146 = vmatprep.subr.mxu0 0.0
      %147 = vmatpush1.msra.mxu0 0.0
      %148 = vmatprep.subr.mxu0 0.0
      %149 = vmatpush1.msra.mxu0 0.0
      %150 = vmatprep.subr.mxu0 0.0
      %151 = vmatpush1.msra.mxu0 0.0
      %152 = vmatprep.mubr.f32.mxu0 0.0
      %153 = vmatmul.mubr.f32.gmra.mrb[0].mxu0 %v86
      %v154 = vpop.f32.mrb[0].mxu0
      %v155 = vadd.f32 %v82, %v154
      %v156 = vpop.f32.mrb[0].mxu0
      %157 = vdwg.mxu0
      %v158 = vmax.f32 %v155, 0.0
      %v159 = vld [vmem:[%s3] sm:$0xff]
      %v160 = vld [vmem:[%s3 + $0x8] sm:$0xff]
      %v161 = vld [vmem:[%s4] sm:$0x1]
      %v163 = vlaneseq
      %v164 = vshrl.u32 %v163, 7
      %v165 = vsub.s32 0, %v164
      %v166 = vrot.slane %v161, %v165
      %vm168 = vcmask 130048
      %v170 = vsel %vm168, %v158, 0
      %172 = vmatprep.subr.mxu0 0.0
      %173 = vmatpush1.msra.mxu0 %v159
      %174 = vmatprep.subr.mxu0 0.0
      %175 = vmatpush1.msra.mxu0 %v160
      %176 = vmatprep.subr.mxu0 0.0
      %177 = vmatpush1.msra.mxu0 0.0
      %178 = vmatprep.subr.mxu0 0.0
      %179 = vmatpush1.msra.mxu0 0.0
      %180 = vmatprep.subr.mxu0 0.0
      %181 = vmatpush1.msra.mxu0 0.0
      %182 = vmatprep.subr.mxu0 0.0
      %183 = vmatpush1.msra.mxu0 0.0
      %184 = vmatprep.subr.mxu0 0.0
      %185 = vmatpush1.msra.mxu0 0.0
      %186 = vmatprep.subr.mxu0 0.0
      %187 = vmatpush1.msra.mxu0 0.0
      %188 = vmatprep.subr.mxu0 0.0
      %189 = vmatpush1.msra.mxu0 0.0
      %190 = vmatprep.subr.mxu0 0.0
      %191 = vmatpush1.msra.mxu0 0.0
      %192 = vmatprep.subr.mxu0 0.0
      %193 = vmatpush1.msra.mxu0 0.0
      %194 = vmatprep.subr.mxu0 0.0
      %195 = vmatpush1.msra.mxu0 0.0
      %196 = vmatprep.subr.mxu0 0.0
      %197 = vmatpush1.msra.mxu0 0.0
      %198 = vmatprep.subr.mxu0 0.0
      %199 = vmatpush1.msra.mxu0 0.0
      %200 = vmatprep.subr.mxu0 0.0
      %201 = vmatpush1.msra.mxu0 0.0
      %202 = vmatprep.subr.mxu0 0.0
      %203 = vmatpush1.msra.mxu0 0.0
      %204 = vmatprep.subr.mxu0 0.0
      %205 = vmatpush1.msra.mxu0 0.0
      %206 = vmatprep.subr.mxu0 0.0
      %207 = vmatpush1.msra.mxu0 0.0
      %208 = vmatprep.subr.mxu0 0.0
      %209 = vmatpush1.msra.mxu0 0.0
      %210 = vmatprep.subr.mxu0 0.0
      %211 = vmatpush1.msra.mxu0 0.0
      %212 = vmatprep.subr.mxu0 0.0
      %213 = vmatpush1.msra.mxu0 0.0
      %214 = vmatprep.subr.mxu0 0.0
      %215 = vmatpush1.msra.mxu0 0.0
      %216 = vmatprep.subr.mxu0 0.0
      %217 = vmatpush1.msra.mxu0 0.0
      %218 = vmatprep.subr.mxu0 0.0
      %219 = vmatpush1.msra.mxu0 0.0
      %220 = vmatprep.subr.mxu0 0.0
      %221 = vmatpush1.msra.mxu0 0.0
      %222 = vmatprep.subr.mxu0 0.0
      %223 = vmatpush1.msra.mxu0 0.0
      %224 = vmatprep.subr.mxu0 0.0
      %225 = vmatpush1.msra.mxu0 0.0
      %226 = vmatprep.subr.mxu0 0.0
      %227 = vmatpush1.msra.mxu0 0.0
      %228 = vmatprep.subr.mxu0 0.0
      %229 = vmatpush1.msra.mxu0 0.0
      %230 = vmatprep.subr.mxu0 0.0
      %231 = vmatpush1.msra.mxu0 0.0
      %232 = vmatprep.subr.mxu0 0.0
      %233 = vmatpush1.msra.mxu0 0.0
      %234 = vmatprep.subr.mxu0 0.0
      %235 = vmatpush1.msra.mxu0 0.0
      %236 = vmatprep.mubr.f32.mxu0 0.0
      %237 = vmatmul.mubr.f32.gmra.mrb[0].mxu0 %v170
      %v238 = vpop.f32.mrb[0].mxu0
      %v239 = vadd.f32 %v166, %v238
      %v240 = vpop.f32.mrb[0].mxu0
      %241 = vdwg.mxu0
      %v242 = vxor.u32 %v239, 2147483648
      %v243 = vmul.f32 %v242, 1.442695
      %v244 = vpow.pop %v243
      %v245 = vadd.f32 %v244, 1.0
      %v246 = vrcp.pop %v245
      %v247 = vmul.f32 1.0, %v246
      %vm248 = vcmask 25600
      %249 = vst.msk [vmem:[#allocation5] sm:$0x3] %vm248, %v247
    $region29: #{tpu_custom_call.1} parent=1 // pred_fallthru
      _
    // Predicated region
    $region30: #{tpu_custom_call.1} parent=1 // pred_check
      _
    $region31: #{tpu_custom_call.1} parent=1 // pred_check_branch
      %251 = sbr.rel (0) target = $region33
    $region32: #{tpu_custom_call.1} parent=1 // pred_region
      %s253 = ssub.s32 128, 128
      %254 = vsyncadd [#allocation4], %s253
      %s256 = sshll.u32 [#allocation3], 4
      %s257 = int_to_ptr.vmem [resolvable:$true] %s256
      %259 = dma.vmem_to_hbm [thread:$0]  %s257, 128, %s5, [#allocation4]
    $region33: #{tpu_custom_call.1} parent=1 // pred_fallthru
      _
    // Predicated region
    $region34: #{tpu_custom_call.1} parent=1 // pred_check
      _
    $region35: #{tpu_custom_call.1} parent=1 // pred_check_branch
      %261 = sbr.rel (0) target = $region37
    $region36: #{tpu_custom_call.1} parent=1 // pred_region
      %s263 = ssub.s32 32, 32
      %264 = vsyncadd [#allocation6], %s263
      %s266 = sshll.u32 [#allocation5], 4
      %s267 = int_to_ptr.vmem [resolvable:$true] %s266
      %269 = dma.vmem_to_hbm [thread:$0]  %s267, 32, %s6, [#allocation6]
    $region37: #{tpu_custom_call.1} parent=1 // pred_fallthru
      _
    // Predicated region
    $region38: #{tpu_custom_call.1} parent=1 // pred_check
      _
    $region39: #{tpu_custom_call.1} parent=1 // pred_check_branch
      %271 = sbr.rel (0) target = $region41
    $region40: #{tpu_custom_call.1} parent=1 // pred_region
      %272 = dma.done [#allocation4], 128
    $region41: #{tpu_custom_call.1} parent=1 // pred_fallthru
      _
    // Predicated region
    $region42: #{tpu_custom_call.1} parent=1 // pred_check
      _
    $region43: #{tpu_custom_call.1} parent=1 // pred_check_branch
      %274 = sbr.rel (0) target = $region45
    $region44: #{tpu_custom_call.1} parent=1 // pred_region
      %275 = dma.done [#allocation6], 32
    $region45: #{tpu_custom_call.1} parent=1 // pred_fallthru
      _
    %276 = vsyncpa [#allocation4], 1
    %277 = vsyncpa [#allocation6], 1

</llo_original>
